<compile_context>
chip_gen: v5e
topology: v5e:2x2
jax: 0.10.0
libtpu: 0.0.40
codegen_flags: <defaults>
</compile_context>

<pallas_src>
import functools

import jax
import jax.numpy as jnp
from jax.experimental import pallas as pl
from jax.experimental.pallas import tpu as pltpu


def _center_loss_kernel(tcol_ref, trow_ref, x_ref, o_ref,
                        mask_ref, invc_ref, acc_ref,
                        *, valid_rows, total_cols, tile_cols, num_inner,
                        need_row_mask, need_col_mask):
    """Refs:
      tcol_ref: (Bp, 1)  int32   labels as a column (padded with a sentinel)
      trow_ref: (1, Bp)  int32   labels as a row
      x_ref:    (Bp, TD) f32/bf16 feature tile (grid: (core, d_tile))
      o_ref:    (1, 1, 1) f32    per-core partial loss
      mask_ref: (Bp, Bp) bf16    VMEM scratch: binary same-label mask (exact)
      invc_ref: (Bp, 1)  f32     VMEM scratch: exact 1/count per row
      acc_ref:  (1, 1)   f32     VMEM scratch: running loss accumulator
    """
    c = pl.program_id(0)          # parallel split of the D reduction (v7x TCs)
    d = pl.program_id(1)          # D-tile index within this core's share

    # Build the binary mask + exact f32 inverse counts once per core; they stay
    # resident in VMEM scratch across all D tiles.
    @pl.when(d == 0)
    def _init():
        same = tcol_ref[...] == trow_ref[...]                       # (Bp, Bp) bool
        counts = jnp.sum(same.astype(jnp.float32), axis=1, keepdims=True)
        mask_ref[...] = same.astype(jnp.bfloat16)                   # 0/1, exact
        invc_ref[...] = 1.0 / counts                                # exact f32
        acc_ref[...] = jnp.zeros_like(acc_ref)

    x = x_ref[...]                                                  # (Bp, TD)

    # Zero out padded batch rows / ragged last-tile columns in-kernel (select,
    # so stale-VMEM NaNs are harmless). Statically skipped on aligned shapes.
    if need_row_mask or need_col_mask:
        valid = None
        if need_row_mask:
            ri = jax.lax.broadcasted_iota(jnp.int32, x.shape, 0)
            valid = ri < valid_rows
        if need_col_mask:
            col0 = (c * num_inner + d) * tile_cols
            ci = jax.lax.broadcasted_iota(jnp.int32, x.shape, 1)
            cm = ci < (total_cols - col0)
            valid = cm if valid is None else (valid & cm)
        x = jnp.where(valid, x, jnp.zeros_like(x))

    # Per-row class-center tile: (Bp,Bp)@(Bp,TD) on the MXU, bf16 in / f32 acc,
    # then exact f32 1/count scaling (one VPU multiply per tile).
    xb = x if x.dtype == jnp.bfloat16 else x.astype(jnp.bfloat16)
    centers = jnp.dot(mask_ref[...], xb, preferred_element_type=jnp.float32)
    centers = centers * invc_ref[...]
    diff = x.astype(jnp.float32) - centers
    acc_ref[...] = acc_ref[...] + jnp.sum(diff * diff, keepdims=True)

    @pl.when(d == pl.num_programs(1) - 1)
    def _fin():
        o_ref[0] = acc_ref[...]


def _round_up(v, m):
    return ((v + m - 1) // m) * m


@jax.jit
def center_loss(inputs, targets, loss_multiplier=1.0):
    """inputs: (B, D) float32/bfloat16, targets: (B,) int. Scalar f32 loss."""
    B, D = inputs.shape
    x = inputs
    if x.dtype not in (jnp.bfloat16, jnp.float32):
        x = x.astype(jnp.float32)
    t = targets.astype(jnp.int32)

    SUB, LANE = 16, 128          # bf16 sublane pack; lane width
    b_pad = max(SUB, _round_up(B, SUB))

    # Pad only the (tiny) label vector; padded rows form one sentinel class
    # whose feature rows are zeroed in-kernel -> they contribute exactly 0.
    if b_pad != B:
        # NOTE: assumes real labels leave headroom below int32 max.
        sentinel = jnp.max(t) + 1
        t = jnp.concatenate(
            [t, jnp.broadcast_to(sentinel, (b_pad - B,)).astype(jnp.int32)])

    # Feature-tile width from a VMEM budget (256-aligned candidates); the
    # ragged last tile is handled in-kernel, so no divisibility requirement.
    bytes_x = 2 if x.dtype == jnp.bfloat16 else 4
    mask_bytes = b_pad * b_pad * 2
    budget = 20 * 1024 * 1024
    td = LANE
    for cand in (2048, 1024, 512, 256, 128):
        # double-buffered x tile + ~3 f32 (Bp,TD) temporaries + resident mask
        if (2 * bytes_x + 3 * 4) * b_pad * cand + mask_bytes <= budget:
            td = cand
            break
    td = min(td, _round_up(D, LANE))
    num_d = pl.cdiv(D, td)

    # v7x megacore: split the D reduction across the 2 TensorCores when even
    # (per-chip HBM traffic for x is unchanged). 1-TC chips just iterate.
    if num_d >= 2 and num_d % 2 == 0:
        num_outer, num_inner = 2, num_d // 2
    else:
        num_outer, num_inner = 1, num_d

    kernel = functools.partial(
        _center_loss_kernel,
        valid_rows=B, total_cols=D, tile_cols=td, num_inner=num_inner,
        need_row_mask=(b_pad != B), need_col_mask=(num_d * td != D))

    out = pl.pallas_call(
        kernel,
        out_shape=jax.ShapeDtypeStruct((num_outer, 1, 1), jnp.float32),
        grid_spec=pltpu.PrefetchScalarGridSpec(
            num_scalar_prefetch=0,
            grid=(num_outer, num_inner),
            in_specs=[
                pl.BlockSpec((b_pad, 1), lambda c, d: (0, 0)),   # labels (col)
                pl.BlockSpec((1, b_pad), lambda c, d: (0, 0)),   # labels (row)
                pl.BlockSpec((b_pad, td),                        # feature tile
                             lambda c, d: (0, c * num_inner + d)),
            ],
            out_specs=pl.BlockSpec((1, 1, 1), lambda c, d: (c, 0, 0)),
            scratch_shapes=[
                pltpu.VMEM((b_pad, b_pad), jnp.bfloat16),        # binary mask
                pltpu.VMEM((b_pad, 1), jnp.float32),             # exact 1/count
                pltpu.VMEM((1, 1), jnp.float32),                 # loss accum
            ],
        ),
        compiler_params=pltpu.CompilerParams(
            dimension_semantics=("parallel", "arbitrary"),       # D = reduction
            vmem_limit_bytes=32 * 1024 * 1024,
        ),
    )(t.reshape(b_pad, 1), t.reshape(1, b_pad), x)

    mult = jnp.asarray(loss_multiplier, dtype=jnp.float32)
    return mult * jnp.sum(out)


def _reference_center_loss(inputs, targets, loss_multiplier=1.0):
    # pure-JAX f32 reference (same math as the PyTorch per-sample loop)
    x = inputs.astype(jnp.float32)
    mask = (targets[:, None] == targets[None, :]).astype(jnp.float32)
    counts = mask.sum(axis=1, keepdims=True)
    centers = (mask @ x) / counts
    return loss_multiplier * jnp.sum((x - centers) ** 2)


if __name__ == "__main__":
    key = jax.random.PRNGKey(0)
    k1, k2, k3 = jax.random.split(key, 3)

    # 1) small ragged shapes: B=8 (padded rows masked in-kernel), D=32 (ragged tile)
    B, D = 8, 32
    x = jax.random.normal(k1, (B, D), dtype=jnp.float32)
    t = jnp.array([0, 0, 1, 1, 2, 2, 3, 3], dtype=jnp.int32)
    loss = jax.block_until_ready(center_loss(x, t, 1.0))
    ref = _reference_center_loss(x, t, 1.0)
    assert jnp.allclose(loss, ref, rtol=2e-2, atol=1e-2), (loss, ref)

    # 2) different multiplier: runtime value, applied in the jitted wrapper
    loss_half = jax.block_until_ready(center_loss(x, t, 0.5))
    assert jnp.allclose(loss_half, 0.5 * ref, rtol=2e-2, atol=1e-2), (loss_half, ref)

    # 3) all-unique labels -> ~0 (matches the PyTorch early return; residual is
    #    only the bf16 rounding of x in the MXU matmul)
    loss0 = jax.block_until_ready(center_loss(x, jnp.arange(B, dtype=jnp.int32), 1.0))
    assert float(loss0) < 1e-2, loss0

    # 4) aligned fast path (no in-kernel masking) with bf16 features accepted as-is
    B2, D2 = 16, 256
    x2 = jax.random.normal(k2, (B2, D2), dtype=jnp.float32).astype(jnp.bfloat16)
    t2 = jnp.concatenate([jnp.arange(4, dtype=jnp.int32)] * 4)
    loss2 = jax.block_until_ready(center_loss(x2, t2, 1.0))
    ref2 = _reference_center_loss(x2, t2, 1.0)
    assert jnp.allclose(loss2, ref2, rtol=2e-2, atol=1e-2), (loss2, ref2)

    # 5) multi-tile feature dim -> grid (2, 2): resident mask reused across
    #    tiles, accumulator reduction, and the parallel 2-way D split
    B3, D3 = 8, 8192
    x3 = jax.random.normal(k3, (B3, D3), dtype=jnp.float32)
    t3 = jnp.array([0, 0, 0, 1, 1, 2, 2, 2], dtype=jnp.int32)
    loss3 = jax.block_until_ready(center_loss(x3, t3, 1.0))
    ref3 = _reference_center_loss(x3, t3, 1.0)
    assert jnp.allclose(loss3, ref3, rtol=5e-2, atol=1e-1), (loss3, ref3)

    print("KERNEL_OK")
</pallas_src>

<mosaic_0001>
module attributes {stable_mosaic.version = 11 : i64} {
  func.func @_center_loss_kernel(%arg0: i32, %arg1: i32, %arg2: memref<16x1xi32, #tpu.memory_space<vmem>>, %arg3: memref<1x16xi32, #tpu.memory_space<vmem>>, %arg4: memref<16x128xf32, #tpu.memory_space<vmem>>, %arg5: memref<1x1x1xf32, #tpu.memory_space<vmem>>, %arg6: memref<16x16xbf16, #tpu.memory_space<vmem>>, %arg7: memref<16x1xf32, #tpu.memory_space<vmem>>, %arg8: memref<1x1xf32, #tpu.memory_space<vmem>>) attributes {dimension_semantics = [#tpu.dimension_semantics<parallel>, #tpu.dimension_semantics<arbitrary>], iteration_bounds = array<i64: 1, 1>, scalar_prefetch = 0 : i64, scratch_operands = 3 : i64, tpu.core_type = #tpu.core_type<tc>, window_params = [{pipeline_mode = #tpu.pipeline_mode<synchronous>, transform_indices = @transform_0, window_bounds = array<i64: 16, 1>}, {pipeline_mode = #tpu.pipeline_mode<synchronous>, transform_indices = @transform_1, window_bounds = array<i64: 1, 16>}, {transform_indices = @transform_2, window_bounds = array<i64: 16, 128>}, {transform_indices = @transform_3, window_bounds = array<i64: 1, 1, 1>}]} {
    %c0_i32 = arith.constant 0 : i32
    %0 = arith.cmpi eq, %arg1, %c0_i32 : i32
    %1 = arith.extui %0 : i1 to i32
    %c0_i32_0 = arith.constant 0 : i32
    %2 = arith.cmpi ne, %1, %c0_i32_0 : i32
    scf.if %2 {
      %c0_14 = arith.constant 0 : index
      %c0_15 = arith.constant 0 : index
      %36 = vector.load %arg2[%c0_14, %c0_15] : memref<16x1xi32, #tpu.memory_space<vmem>>, vector<16x1xi32>
      %c0_16 = arith.constant 0 : index
      %c0_17 = arith.constant 0 : index
      %37 = vector.load %arg3[%c0_16, %c0_17] : memref<1x16xi32, #tpu.memory_space<vmem>>, vector<1x16xi32>
      %38 = vector.broadcast %36 : vector<16x1xi32> to vector<16x16xi32>
      %39 = vector.broadcast %37 : vector<1x16xi32> to vector<16x16xi32>
      %40 = arith.cmpi eq, %38, %39 : vector<16x16xi32>
      %41 = arith.extui %40 : vector<16x16xi1> to vector<16x16xi32>
      %42 = arith.sitofp %41 : vector<16x16xi32> to vector<16x16xf32>
      %cst_18 = arith.constant dense<0.000000e+00> : vector<16xf32>
      %43 = vector.multi_reduction <add>, %42, %cst_18 [1] : vector<16x16xf32> to vector<16xf32>
      %44 = vector.shape_cast %43 : vector<16xf32> to vector<16x1xf32>
      %45 = arith.extui %40 : vector<16x16xi1> to vector<16x16xi32>
      %46 = arith.sitofp %45 : vector<16x16xi32> to vector<16x16xf32>
      %47 = arith.truncf %46 : vector<16x16xf32> to vector<16x16xbf16>
      %c0_19 = arith.constant 0 : index
      %c0_20 = arith.constant 0 : index
      %48 = vector.load %arg6[%c0_19, %c0_20] : memref<16x16xbf16, #tpu.memory_space<vmem>>, vector<16x16xbf16>
      tpu.vector_store %arg6[%c0_19, %c0_20], %47 {strides = array<i32>} : memref<16x16xbf16, #tpu.memory_space<vmem>>, vector<16x16xbf16>,
      %cst_21 = arith.constant 1.000000e+00 : f32
      %49 = vector.broadcast %cst_21 : f32 to vector<16x1xf32>
      %50 = arith.divf %49, %44 : vector<16x1xf32>
      %c0_22 = arith.constant 0 : index
      %c0_23 = arith.constant 0 : index
      %51 = vector.load %arg7[%c0_22, %c0_23] : memref<16x1xf32, #tpu.memory_space<vmem>>, vector<16x1xf32>
      tpu.vector_store %arg7[%c0_22, %c0_23], %50 {strides = array<i32>} : memref<16x1xf32, #tpu.memory_space<vmem>>, vector<16x1xf32>,
      %cst_24 = arith.constant 0.000000e+00 : f32
      %52 = vector.broadcast %cst_24 : f32 to vector<1x1xf32>
      %c0_25 = arith.constant 0 : index
      %c0_26 = arith.constant 0 : index
      %53 = vector.load %arg8[%c0_25, %c0_26] : memref<1x1xf32, #tpu.memory_space<vmem>>, vector<1x1xf32>
      tpu.vector_store %arg8[%c0_25, %c0_26], %52 {strides = array<i32>} : memref<1x1xf32, #tpu.memory_space<vmem>>, vector<1x1xf32>,
    } else {
    }
    %c0 = arith.constant 0 : index
    %c0_1 = arith.constant 0 : index
    %3 = vector.load %arg4[%c0, %c0_1] : memref<16x128xf32, #tpu.memory_space<vmem>>, vector<16x128xf32>
    %4 = tpu.iota {dimensions = array<i32: 0>} : vector<16x128xi32>
    %c8_i32 = arith.constant 8 : i32
    %5 = vector.broadcast %c8_i32 : i32 to vector<16x128xi32>
    %6 = arith.cmpi slt, %4, %5 : vector<16x128xi32>
    %c1_i32 = arith.constant 1 : i32
    %7 = arith.muli %arg0, %c1_i32 : i32
    %8 = arith.addi %7, %arg1 : i32
    %c128_i32 = arith.constant 128 : i32
    %9 = arith.muli %8, %c128_i32 : i32
    %10 = tpu.iota {dimensions = array<i32: 1>} : vector<16x128xi32>
    %c32_i32 = arith.constant 32 : i32
    %11 = arith.subi %c32_i32, %9 : i32
    %12 = vector.broadcast %11 : i32 to vector<16x128xi32>
    %13 = arith.cmpi slt, %10, %12 : vector<16x128xi32>
    %14 = arith.andi %6, %13 : vector<16x128xi1>
    %cst = arith.constant 0.000000e+00 : f32
    %15 = vector.broadcast %cst : f32 to vector<16x128xf32>
    %16 = arith.select %14, %3, %15 : vector<16x128xi1>, vector<16x128xf32>
    %17 = arith.truncf %16 : vector<16x128xf32> to vector<16x128xbf16>
    %c0_2 = arith.constant 0 : index
    %c0_3 = arith.constant 0 : index
    %18 = vector.load %arg6[%c0_2, %c0_3] : memref<16x16xbf16, #tpu.memory_space<vmem>>, vector<16x16xbf16>
    %cst_4 = arith.constant dense<0.000000e+00> : vector<16x128xf32>
    %19 = tpu.matmul %18, %17, %cst_4 {dimension_numbers = #tpu.dot_dimension_numbers<[1], [0], [0], [1], [0, 0, 1, 1], [], []>} : vector<16x16xbf16>, vector<16x128xbf16>, vector<16x128xf32> -> vector<16x128xf32>
    %c0_5 = arith.constant 0 : index
    %c0_6 = arith.constant 0 : index
    %20 = vector.load %arg7[%c0_5, %c0_6] : memref<16x1xf32, #tpu.memory_space<vmem>>, vector<16x1xf32>
    %21 = vector.broadcast %20 : vector<16x1xf32> to vector<16x128xf32>
    %22 = arith.mulf %19, %21 : vector<16x128xf32>
    %23 = arith.subf %16, %22 : vector<16x128xf32>
    %c0_7 = arith.constant 0 : index
    %c0_8 = arith.constant 0 : index
    %24 = vector.load %arg8[%c0_7, %c0_8] : memref<1x1xf32, #tpu.memory_space<vmem>>, vector<1x1xf32>
    %25 = arith.mulf %23, %23 : vector<16x128xf32>
    %26 = vector.shape_cast %25 : vector<16x128xf32> to vector<1x16x128xf32>
    %cst_9 = arith.constant dense<0.000000e+00> : vector<1xf32>
    %27 = vector.multi_reduction <add>, %26, %cst_9 [1, 2] : vector<1x16x128xf32> to vector<1xf32>
    %28 = vector.shape_cast %27 : vector<1xf32> to vector<1x1x1xf32>
    %29 = vector.extract %28[0, 0, 0] : f32 from vector<1x1x1xf32>
    %30 = vector.broadcast %29 : f32 to vector<1x1xf32>
    %31 = arith.addf %24, %30 : vector<1x1xf32>
    %c0_10 = arith.constant 0 : index
    %c0_11 = arith.constant 0 : index
    %32 = vector.load %arg8[%c0_10, %c0_11] : memref<1x1xf32, #tpu.memory_space<vmem>>, vector<1x1xf32>
    tpu.vector_store %arg8[%c0_10, %c0_11], %31 {strides = array<i32>} : memref<1x1xf32, #tpu.memory_space<vmem>>, vector<1x1xf32>,
    %c0_i32_12 = arith.constant 0 : i32
    %33 = arith.cmpi eq, %arg1, %c0_i32_12 : i32
    %34 = arith.extui %33 : i1 to i32
    %c0_i32_13 = arith.constant 0 : i32
    %35 = arith.cmpi ne, %34, %c0_i32_13 : i32
    scf.if %35 {
      %c0_14 = arith.constant 0 : index
      %c0_15 = arith.constant 0 : index
      %36 = vector.load %arg8[%c0_14, %c0_15] : memref<1x1xf32, #tpu.memory_space<vmem>>, vector<1x1xf32>
      %c0_16 = arith.constant 0 : index
      %c0_17 = arith.constant 0 : index
      %c0_18 = arith.constant 0 : index
      %37 = vector.load %arg5[%c0_16, %c0_17, %c0_18] : memref<1x1x1xf32, #tpu.memory_space<vmem>>, vector<1x1x1xf32>
      %38 = vector.shape_cast %37 : vector<1x1x1xf32> to vector<1x1xf32>
      %39 = vector.shape_cast %36 : vector<1x1xf32> to vector<1x1x1xf32>
      tpu.vector_store %arg5[%c0_16, %c0_17, %c0_18], %39 {strides = array<i32>} : memref<1x1x1xf32, #tpu.memory_space<vmem>>, vector<1x1x1xf32>,
    } else {
    }
    return
  }
  func.func @transform_0(%arg0: i32, %arg1: i32) -> (i32, i32) {
    %c0_i32 = arith.constant 0 : i32
    %c0_i32_0 = arith.constant 0 : i32
    %c0_i32_1 = arith.constant 0 : i32
    return %c0_i32, %c0_i32_0 : i32, i32
  }
  func.func @transform_1(%arg0: i32, %arg1: i32) -> (i32, i32) {
    %c0_i32 = arith.constant 0 : i32
    %c0_i32_0 = arith.constant 0 : i32
    %c0_i32_1 = arith.constant 0 : i32
    return %c0_i32, %c0_i32_0 : i32, i32
  }
  func.func @transform_2(%arg0: i32, %arg1: i32) -> (i32, i32) {
    %c1_i32 = arith.constant 1 : i32
    %0 = arith.muli %arg0, %c1_i32 : i32
    %1 = arith.addi %0, %arg1 : i32
    %c0_i32 = arith.constant 0 : i32
    %c0_i32_0 = arith.constant 0 : i32
    return %c0_i32, %1 : i32, i32
  }
  func.func @transform_3(%arg0: i32, %arg1: i32) -> (i32, i32, i32) {
    %c0_i32 = arith.constant 0 : i32
    %c0_i32_0 = arith.constant 0 : i32
    %c0_i32_1 = arith.constant 0 : i32
    return %arg0, %c0_i32, %c0_i32_0 : i32, i32, i32
  }
}

</mosaic_0001>

<llo_original>
// kernel: center_loss.1
$region0: #{center_loss.1}
  #allocation0 [shape = 'u32[]', space=smem, size = 0x4, offset = 0x4, fixed_abs, tag = 'smem constant byte address 0x4 - core index']
  #allocation1 [shape = 'u32[72,128]{1,0:T(1,128)}', space=vmem, size = 0x9000, scoped, tag = 'internal scratch']
  #allocation2 [shape = 'bf16[16,16]{1,0:T(8,128)(2,1)}', space=vmem, size = 0x1000, scoped, tag = 'scratch operand']
  #allocation3 [shape = 'f32[16,1]{1,0:T(8,128)}', space=vmem, size = 0x2000, scoped, tag = 'scratch operand']
  #allocation4 [shape = 'f32[1,1]{1,0:T(1,128)}', space=vmem, size = 0x200, scoped, tag = 'scratch operand']
  %s0 = inlined_call_operand.vmem [shape: s32[16,1], index: 0, kind: input, shape index: {}]
  %s1 = inlined_call_operand.vmem [shape: s32[1,16], index: 1, kind: input, shape index: {}]
  %s2 = inlined_call_operand.vmem [shape: f32[8,32], index: 2, kind: input, shape index: {}]
  %s3 = inlined_call_operand.hbm [shape: f32[1,1,1], index: 3, kind: output, shape index: {}]
  %s4 = sld [smem:[#allocation0]]
  $region30: #{center_loss.1} parent=0
    _
  %s6 = ssub.s32 1, %s4
  %s7 = scalar_select 0, %s6, %s4
  $region1: #{center_loss.1} parent=0
    #allocation5 [shape = 'u8[512]{0}', space=vmem, size = 0x400, scoped, tag = 'output window, operand 0, single buffered']
    #allocation6 [shape = 's32[1]{0}', space=sflag, size = 0x4, scoped, tag = 'scoped memory for center_loss.1']
    %8 = vsyncpa [#allocation6], 0
    // Predicated region
    $region2: #{center_loss.1} parent=1 // pred_check
      _
    $region3: #{center_loss.1} parent=1 // pred_check_branch
      %10 = sbr.rel (0) target = $region5
    $region4: #{center_loss.1} parent=1 // pred_region
      _
    $region5: #{center_loss.1} parent=1 // pred_fallthru
      _
    // Predicated region
    $region6: #{center_loss.1} parent=1 // pred_check
      _
    $region7: #{center_loss.1} parent=1 // pred_check_branch
      %12 = sbr.rel (0) target = $region9
    $region8: #{center_loss.1} parent=1 // pred_region
      _
    $region9: #{center_loss.1} parent=1 // pred_fallthru
      _
    // Predicated region
    $region10: #{center_loss.1} parent=1 // pred_check
      _
    $region11: #{center_loss.1} parent=1 // pred_check_branch
      %14 = sbr.rel (0) target = $region13
    $region12: #{center_loss.1} parent=1 // pred_region
      %s15 = sadd.s32 0, 0
      %p16 = scmp.lt.s32.totalorder %s15, 0
      %s17 = scalar_select %p16, %s15, 0
      %s18 = smul.addr %s17, 8
      %s19 = scalar_lea.vmem %s2, %s18
      %s20 = sadd.s32 0, 0
    $region13: #{center_loss.1} parent=1 // pred_fallthru
      _
    %s21 = sadd.s32 0, 0
    %p22 = scmp.lt.s32.totalorder %s21, 0
    %s23 = scalar_select %p22, %s21, 0
    %s24 = smul.addr %s23, 8
    %s25 = scalar_lea.vmem %s2, %s24
    %s26 = sadd.s32 0, 0
    %p27 = scmp.lt.s32.totalorder %s26, 0
    %s28 = scalar_select %p27, %s26, 0
    %s29 = smul.addr %s28, 8
    %s30 = scalar_lea.vmem %s2, %s29
    %s31 = sadd.s32 0, 0
    %p33 = scmp.eq.s32.totalorder 0, 0
    // Predicated region
    $region14: #{center_loss.1} parent=1 // pred_check
      %p34 = pneg %p33
    $region15: #{center_loss.1} parent=1 // pred_check_branch
      %36 = sbr.rel (%p34) target = $region17
    $region16: #{center_loss.1} parent=1 // pred_region
      %v37 = vld [vmem:[%s0] sm:$0xff]
      %v38 = vld [vmem:[%s0 + $0x8] sm:$0xff]
      %v39 = vld [vmem:[%s1] sm:$0x1]
      %40 = vset.pattern.permute.xlu0 0
      %41 = vperm.xlu0 %40, %v37
      %v42 = vpop.permute.xlu0 %41
      %43 = vset.pattern.permute.xlu0 0
      %44 = vperm.xlu0 %43, %v38
      %v45 = vpop.permute.xlu0 %44
      %v46 = vperm.slane %v39, 0
      %vm47 = vcmp.eq.s32.totalorder %v42, %v46
      %vm48 = vcmp.eq.s32.totalorder %v45, %v46
      %v49 = vsel %vm47, 1, 0
      %v50 = vsel %vm48, 1, 0
      %v51 = vcvt.s32.f32 %v49
      %v52 = vcvt.s32.f32 %v50
      %vm53 = vcmask 130048
      %v54 = vsel %vm53, %v51, 0.0
      %55 = vadd.xlane.f32.xlu0 %v54
      %v56 = vpop.xlane.xlu0 %55
      %v57 = vsel %vm53, %v52, 0.0
      %58 = vadd.xlane.f32.xlu0 %v57
      %v59 = vpop.xlane.xlu0 %58
      %v60 = vpack.c.bf16 %v51, %v51
      %v61 = vpack.c.bf16 %v52, %v52
      %vm62 = vcmask 125952
      %63 = vst.msk [vmem:[#allocation2] sm:$0xf] %vm62, %v60
      %64 = vst.msk [vmem:[#allocation2 + $0x4] sm:$0xf] %vm62, %v61
      %v65 = vrcp.pop %v56
      %v66 = vmul.f32 %v56, %v65
      %v67 = vsub.f32 1.0, %v66
      %v68 = vmul.f32 %v65, %v67
      %v69 = vadd.f32 %v65, %v68
      %vm70 = vweird.f32 %v56
      %vm71 = vweird.f32 %v65
      %vm72 = vmor %vm70, %vm71
      %v73 = vsel %vm72, %v65, %v69
      %v74 = vand.u32 2147483647, %v56
      %vm75 = vcmp.eq.f32.partialorder %v74, 8.507059e+37
      %v76 = vand.u32 %v56, 2147483648
      %v77 = vor.u32 1.1754944e-38, %v76
      %v78 = vsel %vm75, %v77, %v73
      %v79 = vmul.f32 1.0, %v78
      %v80 = vrcp.pop %v59
      %v81 = vmul.f32 %v59, %v80
      %v82 = vsub.f32 1.0, %v81
      %v83 = vmul.f32 %v80, %v82
      %v84 = vadd.f32 %v80, %v83
      %vm85 = vweird.f32 %v59
      %vm86 = vweird.f32 %v80
      %vm87 = vmor %vm85, %vm86
      %v88 = vsel %vm87, %v80, %v84
      %v89 = vand.u32 2147483647, %v59
      %vm90 = vcmp.eq.f32.partialorder %v89, 8.507059e+37
      %v91 = vand.u32 %v59, 2147483648
      %v92 = vor.u32 1.1754944e-38, %v91
      %v93 = vsel %vm90, %v92, %v88
      %v94 = vmul.f32 1.0, %v93
      %vm95 = vcmask 7168
      %96 = vst.msk [vmem:[#allocation3] sm:$0xff] %vm95, %v79
      %97 = vst.msk [vmem:[#allocation3 + $0x8] sm:$0xff] %vm95, %v94
      %vm98 = vcmask 0
      %99 = vst.msk [vmem:[#allocation4] sm:$0x1] %vm98, 0.0
    $region17: #{center_loss.1} parent=1 // pred_fallthru
      _
    %v100 = vld [vmem:[%s30] sm:$0xff]
    %v101 = vld [vmem:[%s30 + $0x8] sm:$0xff]
    %v102 = vlaneseq
    %v103 = vshrl.u32 %v102, 7
    %v104 = vadd.s32 %v103, 8
    %vm105 = vcmp.lt.s32.totalorder %v103, 8
    %vm106 = vcmp.lt.s32.totalorder %v104, 8
    %s107 = sadd.s32 0, 0
    %s108 = smul.u32 %s107, 128
    %v109 = vlaneseq
    %v110 = vand.u32 %v109, 127
    %s111 = ssub.s32 32, %s108
    %v112 = vstv %s111
    %vm113 = vcmp.lt.s32.totalorder %v110, %v112
    %vm114 = vmand %vm105, %vm113
    %vm115 = vmand %vm106, %vm113
    %v116 = vsel %vm114, %v100, 0.0
    %v117 = vsel %vm115, %v101, 0.0
    %v118 = vpack.c.bf16 %v117, %v116
    %v119 = vld [vmem:[#allocation2] sm:$0xf]
    %v120 = vld [vmem:[#allocation2 + $0x4] sm:$0xf]
    %v123 = vunpack.c.l.b16 %v119
    %v124 = vunpack.c.l.b16 %v120
    %v125 = vpack.c.b16 %v124, %v123
    %vm126 = vcmask 130048
    %v128 = vsel %vm126, %v125, 0
    %130 = vmatpush.bf16.msra.mxu0 0
    %131 = vmatpush.bf16.msra.mxu0 0
    %132 = vmatpush.bf16.msra.mxu0 0
    %133 = vmatpush.bf16.msra.mxu0 0
    %134 = vmatpush.bf16.msra.mxu0 0
    %135 = vmatpush.bf16.msra.mxu0 0
    %136 = vmatpush.bf16.msra.mxu0 0
    %137 = vmatpush.bf16.msra.mxu0 %v118
    %138 = vmatmul.bf16.gmra.mxu0 %v128
    %v139 = vpop.f32.mrf.mxu0
    %v140 = vadd.f32 0.0, %v139
    %v141 = vpop.f32.mrf.mxu0
    %v142 = vadd.f32 0.0, %v141
    %143 = vdwg.mxu0
    %v144 = vld [vmem:[#allocation3] sm:$0xff]
    %v145 = vld [vmem:[#allocation3 + $0x8] sm:$0xff]
    %147 = vset.pattern.permute.xlu0 0
    %148 = vperm.xlu0 %147, %v144
    %v149 = vpop.permute.xlu0 %148
    %152 = vset.pattern.permute.xlu0 0
    %153 = vperm.xlu0 %152, %v145
    %v154 = vpop.permute.xlu0 %153
    %v156 = vmul.f32 %v140, %v149
    %v157 = vmul.f32 %v142, %v154
    %v158 = vsub.f32 %v116, %v156
    %v159 = vsub.f32 %v117, %v157
    %v160 = vld [vmem:[#allocation4] sm:$0x1]
    %v161 = vmul.f32 %v158, %v158
    %v162 = vmul.f32 %v159, %v159
    %v163 = vadd.f32 %v161, %v162
    %164 = vadd.xlane.f32.xlu0 %v163
    %v165 = vpop.xlane.xlu0 %164
    %v166 = vrot.slane %v165, 4
    %v167 = vadd.f32 %v165, %v166
    %v168 = vrot.slane %v167, 2
    %v169 = vadd.f32 %v167, %v168
    %v170 = vrot.slane %v169, 1
    %v171 = vadd.f32 %v169, %v170
    %s172 = vtos %v171
    %v173 = vstv %s172
    %v174 = vadd.f32 %v160, %v173
    %vm175 = vcmask 0
    %176 = vst.msk [vmem:[#allocation4] sm:$0x1] %vm175, %v174
    // Predicated region
    $region18: #{center_loss.1} parent=1 // pred_check
      %p177 = pneg %p33
    $region19: #{center_loss.1} parent=1 // pred_check_branch
      %179 = sbr.rel (%p177) target = $region21
    $region20: #{center_loss.1} parent=1 // pred_region
      %v180 = vld [vmem:[#allocation4] sm:$0x1]
      %181 = vst.msk [vmem:[#allocation5] sm:$0x1] %vm175, %v180
    $region21: #{center_loss.1} parent=1 // pred_fallthru
      _
    // Predicated region
    $region22: #{center_loss.1} parent=1 // pred_check
      _
    $region23: #{center_loss.1} parent=1 // pred_check_branch
      %183 = sbr.rel (0) target = $region25
    $region24: #{center_loss.1} parent=1 // pred_region
      %185 = vsyncadd [#allocation6], 0
      %s187 = sshll.u32 [#allocation5], 4
      %s188 = int_to_ptr.vmem [resolvable:$true] %s187
      %s189 = sshll.u32 %s3, 4
      %s190 = int_to_ptr.hbm [resolvable:$true] %s189
      %192 = dma.vmem_to_hbm [thread:$0]  %s188, 16, %s190, [#allocation6]
    $region25: #{center_loss.1} parent=1 // pred_fallthru
      _
    // Predicated region
    $region26: #{center_loss.1} parent=1 // pred_check
      _
    $region27: #{center_loss.1} parent=1 // pred_check_branch
      %194 = sbr.rel (0) target = $region29
    $region28: #{center_loss.1} parent=1 // pred_region
      %196 = dma.done [#allocation6], 16
    $region29: #{center_loss.1} parent=1 // pred_fallthru
      _
    %197 = vsyncpa [#allocation6], 1

</llo_original>
